<compile_context>
chip_gen: v6e
topology: v6e:2x2x1
jax: 0.10.0
libtpu: 0.0.40
codegen_flags: <defaults>
</compile_context>

<pallas_src>
import functools

import jax
import jax.numpy as jnp
from jax.experimental import pallas as pl
from jax.experimental.pallas import tpu as pltpu


def _round_up(x, m):
    return -(-x // m) * m


def _make_kernel(kh, kw, wp, lcols_pad, cin_p):
    """Fused conv (tap-stacked single matmul) + folded-BN bias + ReLU."""

    def kernel(x_ref, w_ref, b_ref, o_ref, slab_ref):
        # x_ref:    (cin_p, tile_in_pad)  bf16  flattened padded input rows for this row-tile
        # w_ref:    (cout_tile, K)        bf16  BN-scaled weights, K = kh*kw*cin_p
        # b_ref:    (cout_tile, 1)        f32   folded BN bias
        # o_ref:    (cout_tile, lcols_pad)      output tile (lane-dense, 128-aligned)
        # slab_ref: (K, lcols_pad)        bf16  tap-stacked activation slab (VMEM scratch)

        # Build the tap-stacked slab once per (batch, row-tile); reused across all Cout
        # tiles (Cout is the innermost, sequential grid axis).
        @pl.when(pl.program_id(2) == 0)
        def _build_slab():
            for i in range(kh):
                for j in range(kw):
                    off = i * wp + j                  # static lane offset of this tap
                    row0 = (i * kw + j) * cin_p       # static, sublane-tile aligned
                    slab_ref[row0:row0 + cin_p, :] = x_ref[:, off:off + lcols_pad]

        # One deep matmul: contraction depth K = kh*kw*cin_p (vs cin_p per tap before).
        acc = jnp.dot(w_ref[...], slab_ref[...], preferred_element_type=jnp.float32)
        y = acc + b_ref[...]                          # BN bias (scale already folded into W)
        o_ref[...] = jnp.maximum(y, 0.0).astype(o_ref.dtype)

    return kernel


def _vmem_capacity_bytes():
    try:
        return int(pltpu.get_tpu_info().vmem_capacity_bytes)
    except Exception:
        return 64 * 1024 * 1024       # conservative fallback (v7x per-TensorCore VMEM)


@functools.partial(jax.jit, static_argnames=("stride", "padding", "groups"))
def conv_bn_relu(x_nchw, weight, gamma, beta, running_mean, running_var,
                 *, stride=1, padding=0, eps=1e-3, groups=1):
    """Forward of ConvBNReLU (inference BN).  x_nchw: (N, Cin, H, W); weight: (Cout, Cin, KH, KW).
    Returns NCHW output matching PyTorch (BatchNorm2d eps defaults to 1e-3 as in the module)."""
    if groups != 1:
        raise NotImplementedError("groups != 1 not supported")  # TODO(synk): grouped conv

    cout, cin, kh, kw = weight.shape
    n, _, h, w = x_nchw.shape

    hp, wp = h + 2 * padding, w + 2 * padding
    ho1, wo1 = hp - kh + 1, wp - kw + 1        # dense (stride-1) output extents
    ho = (hp - kh) // stride + 1
    wo = (wp - kw) // stride + 1

    # ---- static tiling choices ----
    cin_p = _round_up(cin, 16)                 # bf16 sublane-tile aligned tap blocks
    kdim = kh * kw * cin_p                     # stacked contraction depth
    cout_p = _round_up(cout, 8)
    cout_tile = min(cout_p, 128)               # MXU-friendly; keeps f32 acc in vregs
    cout_pt = _round_up(cout_p, cout_tile)
    n_cout_tiles = cout_pt // cout_tile

    # Spatial row-tiling of the dense output (lcols_tile = rows_tile * wp ~ 512 lanes).
    target_lanes = 512
    if ho1 * wp <= 2 * target_lanes:
        rows_tile = ho1                        # single tile (small layers / the demo)
    else:
        rows_tile = max(1, target_lanes // wp)
    rows_tile = min(rows_tile, ho1)
    n_row_tiles = -(-ho1 // rows_tile)

    lcols = rows_tile * wp
    lcols_pad = _round_up(lcols, 128)          # 128-aligned output lane dim
    rows_in = rows_tile + kh - 1               # input rows per tile (with halo)
    tile_in_pad = _round_up((kh - 1) * wp + (kw - 1) + lcols_pad, 128)

    # ---- fold BatchNorm (running stats) into weights / bias, in f32 ----
    # TODO(synk): training-mode BN (batch statistics) not implemented.
    scale = gamma / jnp.sqrt(running_var + eps)
    bias = (beta - running_mean * scale).astype(jnp.float32)
    w_f32 = weight.astype(jnp.float32) * scale[:, None, None, None]
    w_f32 = jnp.pad(w_f32, ((0, cout_pt - cout), (0, cin_p - cin), (0, 0), (0, 0)))
    # (Cout_pt, Cin_p, KH, KW) -> (Cout_pt, K) with K index = (i*kw + j)*cin_p + c
    w_k = jnp.transpose(w_f32, (0, 2, 3, 1)).reshape(cout_pt, kdim).astype(jnp.bfloat16)
    bias2d = jnp.pad(bias, (0, cout_pt - cout)).reshape(cout_pt, 1)

    # ---- activation: cast to bf16 first, then one merged channel+spatial pad ----
    extra_rows = (n_row_tiles * rows_tile + kh - 1) - hp      # ragged last row-tile
    xb = x_nchw.astype(jnp.bfloat16)
    xp = jnp.pad(xb, ((0, 0), (0, cin_p - cin),
                      (padding, padding + extra_rows), (padding, padding)))
    if n_row_tiles == 1:
        xt = xp.reshape(n, 1, cin_p, rows_in * wp)
    else:
        # Per-row-tile input rows (rows_tile + kh - 1: tiny halo duplication only).
        ridx = (jnp.arange(n_row_tiles) * rows_tile)[:, None] + jnp.arange(rows_in)[None, :]
        xt = xp[:, :, ridx, :]                                # (N, Cin_p, T, rows_in, Wp)
        xt = jnp.transpose(xt, (0, 2, 1, 3, 4)).reshape(n, n_row_tiles, cin_p, rows_in * wp)
    xt = jnp.pad(xt, ((0, 0), (0, 0), (0, 0), (0, tile_in_pad - rows_in * wp)))

    kernel = _make_kernel(kh, kw, wp, lcols_pad, cin_p)

    out_itemsize = jnp.dtype(x_nchw.dtype).itemsize
    # ---- VMEM budget & generation-aware scoped limit ----
    vmem_bytes = (2 * cin_p * tile_in_pad * 2                 # x block (double buffered)
                  + 2 * cout_tile * kdim * 2                  # weights
                  + 2 * cout_tile * 128 * 4                   # bias (lane padded)
                  + 2 * cout_tile * lcols_pad * out_itemsize  # output block
                  + kdim * lcols_pad * 2                      # tap slab scratch
                  + cout_tile * lcols_pad * 4                 # f32 accumulator
                  + (2 << 20))
    vmem_limit = None
    if vmem_bytes > 16 * 1024 * 1024:
        cap = max(16 * 1024 * 1024, _vmem_capacity_bytes() - 12 * 1024 * 1024)
        vmem_limit = int(min(vmem_bytes, cap))

    cost = pl.CostEstimate(
        flops=2 * n * n_row_tiles * cout_pt * kdim * lcols_pad,
        transcendentals=0,
        bytes_accessed=int(n * n_row_tiles * cin_p * tile_in_pad * 2
                           + cout_pt * kdim * 2 + cout_pt * 4
                           + n * n_row_tiles * cout_pt * lcols_pad * out_itemsize))

    dense = pl.pallas_call(
        kernel,
        out_shape=jax.ShapeDtypeStruct((n, n_row_tiles, cout_pt, lcols_pad), x_nchw.dtype),
        grid_spec=pltpu.PrefetchScalarGridSpec(
            num_scalar_prefetch=0,
            grid=(n, n_row_tiles, n_cout_tiles),
            in_specs=[
                pl.BlockSpec((None, None, cin_p, tile_in_pad), lambda b, r, c: (b, r, 0, 0)),
                pl.BlockSpec((cout_tile, kdim), lambda b, r, c: (c, 0)),
                pl.BlockSpec((cout_tile, 1), lambda b, r, c: (c, 0)),
            ],
            out_specs=pl.BlockSpec((None, None, cout_tile, lcols_pad),
                                   lambda b, r, c: (b, r, c, 0)),
            scratch_shapes=[pltpu.VMEM((kdim, lcols_pad), jnp.bfloat16)],
        ),
        compiler_params=pltpu.CompilerParams(
            dimension_semantics=("parallel", "parallel", "arbitrary"),
            vmem_limit_bytes=vmem_limit),
        cost_estimate=cost,
    )(xt, w_k, bias2d)

    # Un-flatten: the dense columns are already NCHW order within each row tile.
    out = dense[:, :, :cout, :lcols].reshape(n, n_row_tiles, cout, rows_tile, wp)
    out = jnp.transpose(out, (0, 2, 1, 3, 4)).reshape(n, cout, n_row_tiles * rows_tile, wp)
    out = out[:, :, :ho1, :]
    if stride > 1:
        # TODO(synk): in-kernel strided fast path (currently dense compute + subsample).
        out = out[:, :, ::stride, ::stride]
    return out[:, :, :ho, :wo]


def _reference(x_nchw, weight, gamma, beta, mean, var, *, stride, padding, eps=1e-3):
    y = jax.lax.conv_general_dilated(
        x_nchw, weight, window_strides=(stride, stride),
        padding=((padding, padding), (padding, padding)),
        dimension_numbers=("NCHW", "OIHW", "NCHW"))
    s = (gamma / jnp.sqrt(var + eps)).reshape(1, -1, 1, 1)
    b = (beta - mean * gamma / jnp.sqrt(var + eps)).reshape(1, -1, 1, 1)
    return jnp.maximum(y * s + b, 0.0)


def _run_case(key, n, cin, h, w, cout, k, stride, padding):
    kx, kw_, kg, kb, km, kv = jax.random.split(key, 6)
    x = jax.random.normal(kx, (n, cin, h, w), dtype=jnp.float32)
    weight = jax.random.normal(kw_, (cout, cin, k, k), dtype=jnp.float32) * 0.1
    gamma = 1.0 + 0.1 * jax.random.normal(kg, (cout,), dtype=jnp.float32)
    beta = 0.1 * jax.random.normal(kb, (cout,), dtype=jnp.float32)
    mean = 0.1 * jax.random.normal(km, (cout,), dtype=jnp.float32)
    var = 1.0 + 0.1 * jax.random.uniform(kv, (cout,), dtype=jnp.float32)

    out = conv_bn_relu(x, weight, gamma, beta, mean, var, stride=stride, padding=padding)
    out = jax.block_until_ready(out)
    ref = _reference(x, weight, gamma, beta, mean, var, stride=stride, padding=padding)
    assert out.shape == ref.shape, (out.shape, ref.shape)
    # bf16 MXU inputs with f32 accumulation -> tolerance looser than pure-f32.
    assert jnp.allclose(out, ref, atol=5e-2, rtol=5e-2), \
        f"mismatch vs reference (max_err={float(jnp.max(jnp.abs(out - ref)))})"
    return out


if __name__ == "__main__":
    key = jax.random.PRNGKey(0)
    k1, k2 = jax.random.split(key)

    # Module config consistent with ConvBNReLU(4, 8, 3, stride=1, padding=1).
    out = _run_case(k1, n=2, cin=4, h=16, w=16, cout=8, k=3, stride=1, padding=1)
    assert out.shape == (2, 8, 16, 16), out.shape

    # Exercise the multi-row-tile (halo) path and the strided wrapper path.
    _run_case(k2, n=2, cin=4, h=32, w=32, cout=8, k=3, stride=2, padding=1)

    print("KERNEL_OK")
</pallas_src>

<mosaic_0001>
module attributes {stable_mosaic.version = 11 : i64} {
  func.func @kernel(%arg0: i32, %arg1: i32, %arg2: i32, %arg3: memref<1x1x16x512xbf16, #tpu.memory_space<vmem>>, %arg4: memref<8x144xbf16, #tpu.memory_space<vmem>>, %arg5: memref<8x1xf32, #tpu.memory_space<vmem>>, %arg6: memref<1x1x8x384xf32, #tpu.memory_space<vmem>>, %arg7: memref<144x384xbf16, #tpu.memory_space<vmem>>) attributes {dimension_semantics = [#tpu.dimension_semantics<parallel>, #tpu.dimension_semantics<parallel>, #tpu.dimension_semantics<arbitrary>], iteration_bounds = array<i64: 2, 1, 1>, scalar_prefetch = 0 : i64, scratch_operands = 1 : i64, tpu.core_type = #tpu.core_type<tc>, window_params = [{transform_indices = @transform_0, window_bounds = array<i64: 1, 1, 16, 512>}, {transform_indices = @transform_1, window_bounds = array<i64: 8, 144>}, {transform_indices = @transform_2, window_bounds = array<i64: 8, 1>}, {transform_indices = @transform_3, window_bounds = array<i64: 1, 1, 8, 384>}]} {
    %c0_i32 = arith.constant 0 : i32
    %0 = arith.cmpi eq, %arg2, %c0_i32 : i32
    %1 = arith.extui %0 : i1 to i32
    %c0_i32_0 = arith.constant 0 : i32
    %2 = arith.cmpi ne, %1, %c0_i32_0 : i32
    scf.if %2 {
      %c0_11 = arith.constant 0 : index
      %c0_12 = arith.constant 0 : index
      %c0_13 = arith.constant 0 : index
      %c0_14 = arith.constant 0 : index
      %14 = vector.load %arg3[%c0_11, %c0_12, %c0_13, %c0_14] : memref<1x1x16x512xbf16, #tpu.memory_space<vmem>>, vector<1x1x16x384xbf16>
      %15 = vector.shape_cast %14 : vector<1x1x16x384xbf16> to vector<16x384xbf16>
      %c0_15 = arith.constant 0 : index
      %c0_16 = arith.constant 0 : index
      %16 = vector.load %arg7[%c0_15, %c0_16] : memref<144x384xbf16, #tpu.memory_space<vmem>>, vector<16x384xbf16>
      tpu.vector_store %arg7[%c0_15, %c0_16], %15 {strides = array<i32>} : memref<144x384xbf16, #tpu.memory_space<vmem>>, vector<16x384xbf16>,
      %c0_17 = arith.constant 0 : index
      %c0_18 = arith.constant 0 : index
      %c0_19 = arith.constant 0 : index
      %c1 = arith.constant 1 : index
      %17 = vector.load %arg3[%c0_17, %c0_18, %c0_19, %c1] : memref<1x1x16x512xbf16, #tpu.memory_space<vmem>>, vector<1x1x16x384xbf16>
      %18 = vector.shape_cast %17 : vector<1x1x16x384xbf16> to vector<16x384xbf16>
      %c16 = arith.constant 16 : index
      %c0_20 = arith.constant 0 : index
      %19 = vector.load %arg7[%c16, %c0_20] : memref<144x384xbf16, #tpu.memory_space<vmem>>, vector<16x384xbf16>
      tpu.vector_store %arg7[%c16, %c0_20], %18 {strides = array<i32>} : memref<144x384xbf16, #tpu.memory_space<vmem>>, vector<16x384xbf16>,
      %c0_21 = arith.constant 0 : index
      %c0_22 = arith.constant 0 : index
      %c0_23 = arith.constant 0 : index
      %c2 = arith.constant 2 : index
      %20 = vector.load %arg3[%c0_21, %c0_22, %c0_23, %c2] : memref<1x1x16x512xbf16, #tpu.memory_space<vmem>>, vector<1x1x16x384xbf16>
      %21 = vector.shape_cast %20 : vector<1x1x16x384xbf16> to vector<16x384xbf16>
      %c32 = arith.constant 32 : index
      %c0_24 = arith.constant 0 : index
      %22 = vector.load %arg7[%c32, %c0_24] : memref<144x384xbf16, #tpu.memory_space<vmem>>, vector<16x384xbf16>
      tpu.vector_store %arg7[%c32, %c0_24], %21 {strides = array<i32>} : memref<144x384xbf16, #tpu.memory_space<vmem>>, vector<16x384xbf16>,
      %c0_25 = arith.constant 0 : index
      %c0_26 = arith.constant 0 : index
      %c0_27 = arith.constant 0 : index
      %c18 = arith.constant 18 : index
      %23 = vector.load %arg3[%c0_25, %c0_26, %c0_27, %c18] : memref<1x1x16x512xbf16, #tpu.memory_space<vmem>>, vector<1x1x16x384xbf16>
      %24 = vector.shape_cast %23 : vector<1x1x16x384xbf16> to vector<16x384xbf16>
      %c48 = arith.constant 48 : index
      %c0_28 = arith.constant 0 : index
      %25 = vector.load %arg7[%c48, %c0_28] : memref<144x384xbf16, #tpu.memory_space<vmem>>, vector<16x384xbf16>
      tpu.vector_store %arg7[%c48, %c0_28], %24 {strides = array<i32>} : memref<144x384xbf16, #tpu.memory_space<vmem>>, vector<16x384xbf16>,
      %c0_29 = arith.constant 0 : index
      %c0_30 = arith.constant 0 : index
      %c0_31 = arith.constant 0 : index
      %c19 = arith.constant 19 : index
      %26 = vector.load %arg3[%c0_29, %c0_30, %c0_31, %c19] : memref<1x1x16x512xbf16, #tpu.memory_space<vmem>>, vector<1x1x16x384xbf16>
      %27 = vector.shape_cast %26 : vector<1x1x16x384xbf16> to vector<16x384xbf16>
      %c64 = arith.constant 64 : index
      %c0_32 = arith.constant 0 : index
      %28 = vector.load %arg7[%c64, %c0_32] : memref<144x384xbf16, #tpu.memory_space<vmem>>, vector<16x384xbf16>
      tpu.vector_store %arg7[%c64, %c0_32], %27 {strides = array<i32>} : memref<144x384xbf16, #tpu.memory_space<vmem>>, vector<16x384xbf16>,
      %c0_33 = arith.constant 0 : index
      %c0_34 = arith.constant 0 : index
      %c0_35 = arith.constant 0 : index
      %c20 = arith.constant 20 : index
      %29 = vector.load %arg3[%c0_33, %c0_34, %c0_35, %c20] : memref<1x1x16x512xbf16, #tpu.memory_space<vmem>>, vector<1x1x16x384xbf16>
      %30 = vector.shape_cast %29 : vector<1x1x16x384xbf16> to vector<16x384xbf16>
      %c80 = arith.constant 80 : index
      %c0_36 = arith.constant 0 : index
      %31 = vector.load %arg7[%c80, %c0_36] : memref<144x384xbf16, #tpu.memory_space<vmem>>, vector<16x384xbf16>
      tpu.vector_store %arg7[%c80, %c0_36], %30 {strides = array<i32>} : memref<144x384xbf16, #tpu.memory_space<vmem>>, vector<16x384xbf16>,
      %c0_37 = arith.constant 0 : index
      %c0_38 = arith.constant 0 : index
      %c0_39 = arith.constant 0 : index
      %c36 = arith.constant 36 : index
      %32 = vector.load %arg3[%c0_37, %c0_38, %c0_39, %c36] : memref<1x1x16x512xbf16, #tpu.memory_space<vmem>>, vector<1x1x16x384xbf16>
      %33 = vector.shape_cast %32 : vector<1x1x16x384xbf16> to vector<16x384xbf16>
      %c96 = arith.constant 96 : index
      %c0_40 = arith.constant 0 : index
      %34 = vector.load %arg7[%c96, %c0_40] : memref<144x384xbf16, #tpu.memory_space<vmem>>, vector<16x384xbf16>
      tpu.vector_store %arg7[%c96, %c0_40], %33 {strides = array<i32>} : memref<144x384xbf16, #tpu.memory_space<vmem>>, vector<16x384xbf16>,
      %c0_41 = arith.constant 0 : index
      %c0_42 = arith.constant 0 : index
      %c0_43 = arith.constant 0 : index
      %c37 = arith.constant 37 : index
      %35 = vector.load %arg3[%c0_41, %c0_42, %c0_43, %c37] : memref<1x1x16x512xbf16, #tpu.memory_space<vmem>>, vector<1x1x16x384xbf16>
      %36 = vector.shape_cast %35 : vector<1x1x16x384xbf16> to vector<16x384xbf16>
      %c112 = arith.constant 112 : index
      %c0_44 = arith.constant 0 : index
      %37 = vector.load %arg7[%c112, %c0_44] : memref<144x384xbf16, #tpu.memory_space<vmem>>, vector<16x384xbf16>
      tpu.vector_store %arg7[%c112, %c0_44], %36 {strides = array<i32>} : memref<144x384xbf16, #tpu.memory_space<vmem>>, vector<16x384xbf16>,
      %c0_45 = arith.constant 0 : index
      %c0_46 = arith.constant 0 : index
      %c0_47 = arith.constant 0 : index
      %c38 = arith.constant 38 : index
      %38 = vector.load %arg3[%c0_45, %c0_46, %c0_47, %c38] : memref<1x1x16x512xbf16, #tpu.memory_space<vmem>>, vector<1x1x16x384xbf16>
      %39 = vector.shape_cast %38 : vector<1x1x16x384xbf16> to vector<16x384xbf16>
      %c128 = arith.constant 128 : index
      %c0_48 = arith.constant 0 : index
      %40 = vector.load %arg7[%c128, %c0_48] : memref<144x384xbf16, #tpu.memory_space<vmem>>, vector<16x384xbf16>
      tpu.vector_store %arg7[%c128, %c0_48], %39 {strides = array<i32>} : memref<144x384xbf16, #tpu.memory_space<vmem>>, vector<16x384xbf16>,
    } else {
    }
    %c0 = arith.constant 0 : index
    %c0_1 = arith.constant 0 : index
    %3 = vector.load %arg4[%c0, %c0_1] : memref<8x144xbf16, #tpu.memory_space<vmem>>, vector<8x144xbf16>
    %c0_2 = arith.constant 0 : index
    %c0_3 = arith.constant 0 : index
    %4 = vector.load %arg7[%c0_2, %c0_3] : memref<144x384xbf16, #tpu.memory_space<vmem>>, vector<144x384xbf16>
    %cst = arith.constant dense<0.000000e+00> : vector<8x384xf32>
    %5 = tpu.matmul %3, %4, %cst {dimension_numbers = #tpu.dot_dimension_numbers<[1], [0], [0], [1], [0, 0, 1, 1], [], []>} : vector<8x144xbf16>, vector<144x384xbf16>, vector<8x384xf32> -> vector<8x384xf32>
    %c0_4 = arith.constant 0 : index
    %c0_5 = arith.constant 0 : index
    %6 = vector.load %arg5[%c0_4, %c0_5] : memref<8x1xf32, #tpu.memory_space<vmem>>, vector<8x1xf32>
    %7 = vector.broadcast %6 : vector<8x1xf32> to vector<8x384xf32>
    %8 = arith.addf %5, %7 : vector<8x384xf32>
    %cst_6 = arith.constant 0.000000e+00 : f32
    %9 = vector.broadcast %cst_6 : f32 to vector<8x384xf32>
    %10 = arith.maximumf %8, %9 : vector<8x384xf32>
    %c0_7 = arith.constant 0 : index
    %c0_8 = arith.constant 0 : index
    %c0_9 = arith.constant 0 : index
    %c0_10 = arith.constant 0 : index
    %11 = vector.load %arg6[%c0_7, %c0_8, %c0_9, %c0_10] : memref<1x1x8x384xf32, #tpu.memory_space<vmem>>, vector<1x1x8x384xf32>
    %12 = vector.shape_cast %11 : vector<1x1x8x384xf32> to vector<8x384xf32>
    %13 = vector.shape_cast %10 : vector<8x384xf32> to vector<1x1x8x384xf32>
    tpu.vector_store %arg6[%c0_7, %c0_8, %c0_9, %c0_10], %13 {strides = array<i32>} : memref<1x1x8x384xf32, #tpu.memory_space<vmem>>, vector<1x1x8x384xf32>,
    return
  }
  func.func @transform_0(%arg0: i32, %arg1: i32, %arg2: i32) -> (i32, i32, i32, i32) {
    %c0_i32 = arith.constant 0 : i32
    %c0_i32_0 = arith.constant 0 : i32
    %c0_i32_1 = arith.constant 0 : i32
    return %arg0, %arg1, %c0_i32, %c0_i32_0 : i32, i32, i32, i32
  }
  func.func @transform_1(%arg0: i32, %arg1: i32, %arg2: i32) -> (i32, i32) {
    %c0_i32 = arith.constant 0 : i32
    %c0_i32_0 = arith.constant 0 : i32
    return %arg2, %c0_i32 : i32, i32
  }
  func.func @transform_2(%arg0: i32, %arg1: i32, %arg2: i32) -> (i32, i32) {
    %c0_i32 = arith.constant 0 : i32
    %c0_i32_0 = arith.constant 0 : i32
    return %arg2, %c0_i32 : i32, i32
  }
  func.func @transform_3(%arg0: i32, %arg1: i32, %arg2: i32) -> (i32, i32, i32, i32) {
    %c0_i32 = arith.constant 0 : i32
    %c0_i32_0 = arith.constant 0 : i32
    return %arg0, %arg1, %arg2, %c0_i32 : i32, i32, i32, i32
  }
}

</mosaic_0001>

<llo_original>
// kernel: conv_bn_relu.1
$region0: #{conv_bn_relu.1}
  #allocation0 [shape = 'u32[]', space=smem, size = 0x4, offset = 0x4, fixed_abs, tag = 'smem constant byte address 0x4 - core index']
  #allocation1 [shape = 'u32[144,128]{1,0:T(1,128)}', space=vmem, size = 0x12000, scoped, tag = 'internal scratch']
  #allocation2 [shape = 'bf16[144,384]{1,0:T(8,128)(2,1)}', space=vmem, size = 0x1b000, scoped, tag = 'scratch operand']
  %s0 = inlined_call_operand.vmem [shape: bf16[2,1,16,512], index: 0, kind: input, shape index: {}]
  %s1 = inlined_call_operand.vmem [shape: bf16[8,144], index: 1, kind: input, shape index: {}]
  %s2 = inlined_call_operand.vmem [shape: f32[8,1], index: 2, kind: input, shape index: {}]
  %s3 = inlined_call_operand.vmem [shape: f32[2,1,8,384], index: 3, kind: output, shape index: {}]
  %s4 = sld [smem:[#allocation0]]
  $region49: #{conv_bn_relu.1} parent=0
    _
  %s6 = ssub.s32 1, %s4
  %s7 = scalar_select 0, %s6, %s4
  loop: start=0, step=1, limit=4
  $region2: #{conv_bn_relu.1} parent=0 // loop_pre_header
    _
  $region3: #{conv_bn_relu.1} parent=0 // loop_header
    %s9 = sphi 0, %s13
    %p10 = scmp.ge.s32.totalorder %s9, 4
    %s16 = sphi 0, %s35
    %s17 = sphi 0, %s31
    %s18 = sphi 0, %s27
    %s19 = sphi 0, %s16
    %s20 = sphi 0, %s17
    %s21 = sphi 0, %s18
    %s22 = sphi 0, %s19
    %s23 = sphi 0, %s20
    %s24 = sphi 0, %s21
    %s40 = sphi 0, %s42
    %s43 = sphi 0, %s40
    %s44 = sphi 0, %s43
    %s60 = sphi 0, %s44
    %s66 = sphi 0, %s68
    %s69 = sphi 0, %s66
    %s70 = sphi 0, %s69
    %s86 = sphi 0, %s70
    %s92 = sphi 0, %s94
    %s95 = sphi 0, %s92
    %s96 = sphi 0, %s95
    %s112 = sphi 0, %s96
    %s122 = sphi 0, %s124
    %s125 = sphi 0, %s122
    %s126 = sphi 0, %s125
    %s142 = sphi 0, %s126
  $region4: #{conv_bn_relu.1} parent=0 // loop_header_branch
    %12 = sbr.rel (%p10) target = $region8
  $region5: #{conv_bn_relu.1} parent=0 // loop_body
    %s14 = ssub.s32 %s9, 1
    %s15 = ssub.s32 %s9, 2
    %s25 = sadd.s32 1, %s18
    %p26 = scmp.ge.s32.totalorder %s25, 1
    %s27 = scalar_select %p26, 0, %s25
    %s28 = sadd.s32 1, %s17
    %s29 = scalar_select %p26, %s28, %s17
    %p30 = scmp.ge.s32.totalorder %s29, 1
    %s31 = scalar_select %p30, 0, %s29
    %s32 = sadd.s32 1, %s16
    %s33 = scalar_select %p30, %s32, %s16
    %p34 = scmp.ge.s32.totalorder %s33, 2
    %s35 = scalar_select %p34, 0, %s33
    %s36 = ssub.s32 %s16, %s35
    %s37 = ssub.s32 %s17, %s31
    %s38 = sor.u32 %s36, %s37
    %p39 = scmp.eq.s32.totalorder %s38, 0
    %s41 = sadd.s32 %s40, 1
    %s42 = scalar_select %p39, %s40, %s41
    %p45 = pneg %p39
    %p46 = scmp.eq.s32.totalorder %s9, 1
    %p47 = por %p45, %p46
    %p48 = scmp.ne.s32.totalorder %s40, %s43
    %p49 = scmp.eq.s32.totalorder %s9, 0
    %p50 = por %p48, %p49
    %p51 = scmp.ne.s32.totalorder %s40, %s43
    %p52 = scmp.eq.s32.totalorder %s14, 1
    %p53 = por %p51, %p52
    %p54 = scmp.ne.s32.totalorder %s43, %s44
    %p55 = scmp.eq.s32.totalorder %s14, 0
    %p56 = por %p54, %p55
    %p57 = scmp.ne.s32.totalorder %s43, %s44
    %p58 = scmp.eq.s32.totalorder %s15, 1
    %p59 = por %p57, %p58
    %p61 = scmp.ne.s32.totalorder %s44, %s60
    %p62 = scmp.eq.s32.totalorder %s15, 0
    %p63 = por %p61, %p62
    %s64 = ssub.s32 %s18, %s27
    %p65 = scmp.eq.s32.totalorder %s64, 0
    %s67 = sadd.s32 %s66, 1
    %s68 = scalar_select %p65, %s66, %s67
    %p71 = pneg %p65
    %p72 = scmp.eq.s32.totalorder %s9, 1
    %p73 = por %p71, %p72
    %p74 = scmp.ne.s32.totalorder %s66, %s69
    %p75 = scmp.eq.s32.totalorder %s9, 0
    %p76 = por %p74, %p75
    %p77 = scmp.ne.s32.totalorder %s66, %s69
    %p78 = scmp.eq.s32.totalorder %s14, 1
    %p79 = por %p77, %p78
    %p80 = scmp.ne.s32.totalorder %s69, %s70
    %p81 = scmp.eq.s32.totalorder %s14, 0
    %p82 = por %p80, %p81
    %p83 = scmp.ne.s32.totalorder %s69, %s70
    %p84 = scmp.eq.s32.totalorder %s15, 1
    %p85 = por %p83, %p84
    %p87 = scmp.ne.s32.totalorder %s70, %s86
    %p88 = scmp.eq.s32.totalorder %s15, 0
    %p89 = por %p87, %p88
    %s90 = ssub.s32 %s18, %s27
    %p91 = scmp.eq.s32.totalorder %s90, 0
    %s93 = sadd.s32 %s92, 1
    %s94 = scalar_select %p91, %s92, %s93
    %p97 = pneg %p91
    %p98 = scmp.eq.s32.totalorder %s9, 1
    %p99 = por %p97, %p98
    %p100 = scmp.ne.s32.totalorder %s92, %s95
    %p101 = scmp.eq.s32.totalorder %s9, 0
    %p102 = por %p100, %p101
    %p103 = scmp.ne.s32.totalorder %s92, %s95
    %p104 = scmp.eq.s32.totalorder %s14, 1
    %p105 = por %p103, %p104
    %p106 = scmp.ne.s32.totalorder %s95, %s96
    %p107 = scmp.eq.s32.totalorder %s14, 0
    %p108 = por %p106, %p107
    %p109 = scmp.ne.s32.totalorder %s95, %s96
    %p110 = scmp.eq.s32.totalorder %s15, 1
    %p111 = por %p109, %p110
    %p113 = scmp.ne.s32.totalorder %s96, %s112
    %p114 = scmp.eq.s32.totalorder %s15, 0
    %p115 = por %p113, %p114
    %s116 = ssub.s32 %s16, %s35
    %s117 = ssub.s32 %s17, %s31
    %s118 = sor.u32 %s116, %s117
    %s119 = ssub.s32 %s18, %s27
    %s120 = sor.u32 %s118, %s119
    %p121 = scmp.eq.s32.totalorder %s120, 0
    %s123 = sadd.s32 %s122, 1
    %s124 = scalar_select %p121, %s122, %s123
    %p127 = pneg %p121
    %p128 = scmp.eq.s32.totalorder %s9, 1
    %p129 = por %p127, %p128
    %p130 = scmp.ne.s32.totalorder %s122, %s125
    %p131 = scmp.eq.s32.totalorder %s9, 0
    %p132 = por %p130, %p131
    %p133 = scmp.ne.s32.totalorder %s122, %s125
    %p134 = scmp.eq.s32.totalorder %s14, 1
    %p135 = por %p133, %p134
    %p136 = scmp.ne.s32.totalorder %s125, %s126
    %p137 = scmp.eq.s32.totalorder %s14, 0
    %p138 = por %p136, %p137
    %p139 = scmp.ne.s32.totalorder %s125, %s126
    %p140 = scmp.eq.s32.totalorder %s15, 1
    %p141 = por %p139, %p140
    %p143 = scmp.ne.s32.totalorder %s126, %s142
    %p144 = scmp.eq.s32.totalorder %s15, 0
    %p145 = por %p143, %p144
    %p146 = scmp.le.s32.totalorder 1, %s9
    %p147 = scmp.lt.s32.totalorder %s9, 3
    %p148 = pnand %p146, %p147
    %p149 = pneg %p148
    // Predicated region
    $region9: #{conv_bn_relu.1} parent=5 // pred_check
      _
    $region10: #{conv_bn_relu.1} parent=5 // pred_check_branch
      %151 = sbr.rel (%p148) target = $region12
    $region11: #{conv_bn_relu.1} parent=5 // pred_region
      %s152 = ssub.s32 %s9, 1
      // Predicated region
      $region13: #{conv_bn_relu.1} parent=11 // pred_check
        %p153 = pneg %p82
      $region14: #{conv_bn_relu.1} parent=11 // pred_check_branch
        %155 = sbr.rel (%p153) target = $region16
      $region15: #{conv_bn_relu.1} parent=11 // pred_region
        %p156 = scmp.lt.s32.totalorder %s21, 0
        %s157 = scalar_select %p156, %s21, 0
        %s158 = smul.addr %s157, 2
        %s159 = smul.addr %s158, 4
        %s160 = scalar_lea.vmem %s1, %s159
      $region16: #{conv_bn_relu.1} parent=11 // pred_fallthru
        _
      // Predicated region
      $region17: #{conv_bn_relu.1} parent=11 // pred_check
        %p161 = pneg %p108
      $region18: #{conv_bn_relu.1} parent=11 // pred_check_branch
        %163 = sbr.rel (%p161) target = $region20
      $region19: #{conv_bn_relu.1} parent=11 // pred_region
        %p164 = scmp.lt.s32.totalorder %s21, 0
        %s165 = scalar_select %p164, %s21, 0
        %s166 = smul.addr %s165, 8
        %s167 = scalar_lea.vmem %s2, %s166
      $region20: #{conv_bn_relu.1} parent=11 // pred_fallthru
        _
    $region12: #{conv_bn_relu.1} parent=5 // pred_fallthru
      _
    %p168 = scmp.lt.s32.totalorder %s9, 2
    // Predicated region
    $region21: #{conv_bn_relu.1} parent=5 // pred_check
      %p169 = pneg %p168
    $region22: #{conv_bn_relu.1} parent=5 // pred_check_branch
      %171 = sbr.rel (%p169) target = $region24
    $region23: #{conv_bn_relu.1} parent=5 // pred_region
      // Predicated region
      $region25: #{conv_bn_relu.1} parent=23 // pred_check
        %p172 = pneg %p50
      $region26: #{conv_bn_relu.1} parent=23 // pred_check_branch
        %174 = sbr.rel (%p172) target = $region28
      $region27: #{conv_bn_relu.1} parent=23 // pred_region
        %p175 = scmp.lt.s32.totalorder %s16, 1
        %s176 = scalar_select %p175, %s16, 1
        %p177 = scmp.lt.s32.totalorder %s17, 0
        %s178 = scalar_select %p177, %s17, 0
        %s179 = smul.addr %s178, 8
        %s180 = smul.addr %s176, 8
        %s181 = sadd.s32 %s179, %s180
        %s182 = smul.addr %s181, 4
        %s183 = scalar_lea.vmem %s0, %s182
      $region28: #{conv_bn_relu.1} parent=23 // pred_fallthru
        _
    $region24: #{conv_bn_relu.1} parent=5 // pred_fallthru
      _
    %p184 = scmp.le.s32.totalorder 1, %s9
    %p185 = scmp.lt.s32.totalorder %s9, 3
    %p186 = pnand %p184, %p185
    %p187 = pneg %p186
    // Predicated region
    $region29: #{conv_bn_relu.1} parent=5 // pred_check
      _
    $region30: #{conv_bn_relu.1} parent=5 // pred_check_branch
      %189 = sbr.rel (%p186) target = $region32
    $region31: #{conv_bn_relu.1} parent=5 // pred_region
      %s190 = ssub.s32 %s9, 1
      %p191 = scmp.lt.s32.totalorder %s19, 1
      %s192 = scalar_select %p191, %s19, 1
      %p193 = scmp.lt.s32.totalorder %s20, 0
      %s194 = scalar_select %p193, %s20, 0
      %s195 = smul.addr %s194, 8
      %s196 = smul.addr %s192, 8
      %s197 = sadd.s32 %s195, %s196
      %s198 = smul.addr %s197, 4
      %s199 = scalar_lea.vmem %s0, %s198
      %p200 = pneg %p56
      %p201 = pneg %p53
      %p202 = scmp.lt.s32.totalorder %s21, 0
      %s203 = scalar_select %p202, %s21, 0
      %s204 = smul.addr %s203, 2
      %s205 = smul.addr %s204, 4
      %s206 = scalar_lea.vmem %s1, %s205
      %p207 = pneg %p82
      %p208 = pneg %p79
      %p209 = scmp.lt.s32.totalorder %s21, 0
      %s210 = scalar_select %p209, %s21, 0
      %s211 = smul.addr %s210, 8
      %s212 = scalar_lea.vmem %s2, %s211
      %p213 = pneg %p108
      %p214 = pneg %p105
      %p215 = pneg %p138
      %p216 = pneg %p135
      %p217 = scmp.lt.s32.totalorder %s19, 1
      %s218 = scalar_select %p217, %s19, 1
      %p219 = scmp.lt.s32.totalorder %s20, 0
      %s220 = scalar_select %p219, %s20, 0
      %p221 = scmp.lt.s32.totalorder %s21, 0
      %s222 = scalar_select %p221, %s21, 0
      %s223 = smul.addr %s222, 3
      %s224 = smul.addr %s220, 3
      %s225 = sadd.s32 %s223, %s224
      %s226 = smul.addr %s218, 3
      %s227 = sadd.s32 %s225, %s226
      %s228 = smul.addr %s227, 8
      %s229 = scalar_lea.vmem %s3, %s228
      %p230 = scmp.lt.s32.totalorder %s19, 1
      %s231 = scalar_select %p230, %s19, 1
      %p232 = scmp.lt.s32.totalorder %s20, 0
      %s233 = scalar_select %p232, %s20, 0
      %s234 = smul.addr %s233, 8
      %s235 = smul.addr %s231, 8
      %s236 = sadd.s32 %s234, %s235
      %s237 = smul.addr %s236, 4
      %s238 = scalar_lea.vmem %s0, %s237
      %p239 = scmp.lt.s32.totalorder %s21, 0
      %s240 = scalar_select %p239, %s21, 0
      %s241 = smul.addr %s240, 2
      %s242 = smul.addr %s241, 4
      %s243 = scalar_lea.vmem %s1, %s242
      %p244 = scmp.lt.s32.totalorder %s21, 0
      %s245 = scalar_select %p244, %s21, 0
      %s246 = smul.addr %s245, 8
      %s247 = scalar_lea.vmem %s2, %s246
      %p248 = scmp.lt.s32.totalorder %s19, 1
      %s249 = scalar_select %p248, %s19, 1
      %p250 = scmp.lt.s32.totalorder %s20, 0
      %s251 = scalar_select %p250, %s20, 0
      %p252 = scmp.lt.s32.totalorder %s21, 0
      %s253 = scalar_select %p252, %s21, 0
      %s254 = smul.addr %s253, 3
      %s255 = smul.addr %s251, 3
      %s256 = sadd.s32 %s254, %s255
      %s257 = smul.addr %s249, 3
      %s258 = sadd.s32 %s256, %s257
      %s259 = smul.addr %s258, 8
      %s260 = scalar_lea.vmem %s3, %s259
      %p262 = scmp.eq.s32.totalorder %s21, 0
      // Predicated region
      $region33: #{conv_bn_relu.1} parent=31 // pred_check
        %p263 = pneg %p262
      $region34: #{conv_bn_relu.1} parent=31 // pred_check_branch
        %265 = sbr.rel (%p263) target = $region36
      $region35: #{conv_bn_relu.1} parent=31 // pred_region
        %v266 = vld [vmem:[%s238] sm:$0xff]
        %v267 = vld [vmem:[%s238 + $0x8] sm:$0xf]
        %v268 = vld [vmem:[%s238 + $0x10] sm:$0xff]
        %v269 = vld [vmem:[%s238 + $0x18] sm:$0xf]
        %270 = vst [vmem:[#allocation2] sm:$0xff] %v266
        %271 = vst [vmem:[#allocation2 + $0x8] sm:$0xf] %v267
        %272 = vst [vmem:[#allocation2 + $0xc] sm:$0xff] %v268
        %273 = vst [vmem:[#allocation2 + $0x14] sm:$0xf] %v269
        %v274 = vld [vmem:[%s238] sm:$0xff]
        %v275 = vld [vmem:[%s238 + $0x8] sm:$0xff]
        %v276 = vld [vmem:[%s238 + $0x10] sm:$0xff]
        %v277 = vld [vmem:[%s238 + $0x18] sm:$0xff]
        %282 = vrot.lane.b32.xlu0 %v274, 127
        %v283 = vpop.permute.xlu0 %282
        %284 = vrot.lane.b32.xlu0 %v275, 127
        %v285 = vpop.permute.xlu0 %284
        %286 = vrot.lane.b32.xlu0 %v276, 127
        %v287 = vpop.permute.xlu0 %286
        %288 = vrot.lane.b32.xlu0 %v277, 127
        %v289 = vpop.permute.xlu0 %288
        %v290 = vrot.slane %v283, 4
        %v291 = vrot.slane %v285, 4
        %v292 = vrot.slane %v287, 4
        %v293 = vrot.slane %v289, 4
        %vm294 = vcmask 1043456
        %v295 = vsel %vm294, %v290, %v291
        %vm296 = vcmask 1039360
        %v297 = vsel %vm296, %v283, %v295
        %v298 = vsel %vm296, %v285, %v291
        %v299 = vsel %vm294, %v292, %v293
        %v300 = vsel %vm296, %v287, %v299
        %v301 = vsel %vm296, %v289, %v293
        %306 = vst [vmem:[#allocation2 + $0x18] sm:$0xff] %v297
        %307 = vst [vmem:[#allocation2 + $0x20] sm:$0xf] %v298
        %308 = vst [vmem:[#allocation2 + $0x24] sm:$0xff] %v300
        %309 = vst [vmem:[#allocation2 + $0x2c] sm:$0xf] %v301
        %v310 = vld [vmem:[%s238] sm:$0xff]
        %v311 = vld [vmem:[%s238 + $0x8] sm:$0xff]
        %v312 = vld [vmem:[%s238 + $0x10] sm:$0xff]
        %v313 = vld [vmem:[%s238 + $0x18] sm:$0xff]
        %318 = vrot.lane.b32.xlu0 %v310, 126
        %v319 = vpop.permute.xlu0 %318
        %320 = vrot.lane.b32.xlu0 %v311, 126
        %v321 = vpop.permute.xlu0 %320
        %322 = vrot.lane.b32.xlu0 %v312, 126
        %v323 = vpop.permute.xlu0 %322
        %324 = vrot.lane.b32.xlu0 %v313, 126
        %v325 = vpop.permute.xlu0 %324
        %v326 = vrot.slane %v319, 4
        %v327 = vrot.slane %v321, 4
        %v328 = vrot.slane %v323, 4
        %v329 = vrot.slane %v325, 4
        %v330 = vsel %vm294, %v326, %v327
        %vm331 = vcmask 1031168
        %v332 = vsel %vm331, %v319, %v330
        %v333 = vsel %vm331, %v321, %v327
        %v334 = vsel %vm294, %v328, %v329
        %v335 = vsel %vm331, %v323, %v334
        %v336 = vsel %vm331, %v325, %v329
        %341 = vst [vmem:[#allocation2 + $0x30] sm:$0xff] %v332
        %342 = vst [vmem:[#allocation2 + $0x38] sm:$0xf] %v333
        %343 = vst [vmem:[#allocation2 + $0x3c] sm:$0xff] %v335
        %344 = vst [vmem:[#allocation2 + $0x44] sm:$0xf] %v336
        %v345 = vld [vmem:[%s238] sm:$0xff]
        %v346 = vld [vmem:[%s238 + $0x8] sm:$0xff]
        %v347 = vld [vmem:[%s238 + $0x10] sm:$0xff]
        %v348 = vld [vmem:[%s238 + $0x18] sm:$0xff]
        %353 = vrot.lane.b32.xlu0 %v345, 110
        %v354 = vpop.permute.xlu0 %353
        %355 = vrot.lane.b32.xlu0 %v346, 110
        %v356 = vpop.permute.xlu0 %355
        %357 = vrot.lane.b32.xlu0 %v347, 110
        %v358 = vpop.permute.xlu0 %357
        %359 = vrot.lane.b32.xlu0 %v348, 110
        %v360 = vpop.permute.xlu0 %359
        %v361 = vrot.slane %v354, 4
        %v362 = vrot.slane %v356, 4
        %v363 = vrot.slane %v358, 4
        %v364 = vrot.slane %v360, 4
        %v365 = vsel %vm294, %v361, %v362
        %vm366 = vcmask 900096
        %v367 = vsel %vm366, %v354, %v365
        %v368 = vsel %vm366, %v356, %v362
        %v369 = vsel %vm294, %v363, %v364
        %v370 = vsel %vm366, %v358, %v369
        %v371 = vsel %vm366, %v360, %v364
        %376 = vst [vmem:[#allocation2 + $0x48] sm:$0xff] %v367
        %377 = vst [vmem:[#allocation2 + $0x50] sm:$0xf] %v368
        %378 = vst [vmem:[#allocation2 + $0x54] sm:$0xff] %v370
        %379 = vst [vmem:[#allocation2 + $0x5c] sm:$0xf] %v371
        %v380 = vld [vmem:[%s238] sm:$0xff]
        %v381 = vld [vmem:[%s238 + $0x8] sm:$0xff]
        %v382 = vld [vmem:[%s238 + $0x10] sm:$0xff]
        %v383 = vld [vmem:[%s238 + $0x18] sm:$0xff]
        %388 = vrot.lane.b32.xlu0 %v380, 109
        %v389 = vpop.permute.xlu0 %388
        %390 = vrot.lane.b32.xlu0 %v381, 109
        %v391 = vpop.permute.xlu0 %390
        %392 = vrot.lane.b32.xlu0 %v382, 109
        %v393 = vpop.permute.xlu0 %392
        %394 = vrot.lane.b32.xlu0 %v383, 109
        %v395 = vpop.permute.xlu0 %394
        %v396 = vrot.slane %v389, 4
        %v397 = vrot.slane %v391, 4
        %v398 = vrot.slane %v393, 4
        %v399 = vrot.slane %v395, 4
        %v400 = vsel %vm294, %v396, %v397
        %vm401 = vcmask 891904
        %v402 = vsel %vm401, %v389, %v400
        %v403 = vsel %vm401, %v391, %v397
        %v404 = vsel %vm294, %v398, %v399
        %v405 = vsel %vm401, %v393, %v404
        %v406 = vsel %vm401, %v395, %v399
        %411 = vst [vmem:[#allocation2 + $0x60] sm:$0xff] %v402
        %412 = vst [vmem:[#allocation2 + $0x68] sm:$0xf] %v403
        %413 = vst [vmem:[#allocation2 + $0x6c] sm:$0xff] %v405
        %414 = vst [vmem:[#allocation2 + $0x74] sm:$0xf] %v406
        %v415 = vld [vmem:[%s238] sm:$0xff]
        %v416 = vld [vmem:[%s238 + $0x8] sm:$0xff]
        %v417 = vld [vmem:[%s238 + $0x10] sm:$0xff]
        %v418 = vld [vmem:[%s238 + $0x18] sm:$0xff]
        %423 = vrot.lane.b32.xlu0 %v415, 108
        %v424 = vpop.permute.xlu0 %423
        %425 = vrot.lane.b32.xlu0 %v416, 108
        %v426 = vpop.permute.xlu0 %425
        %427 = vrot.lane.b32.xlu0 %v417, 108
        %v428 = vpop.permute.xlu0 %427
        %429 = vrot.lane.b32.xlu0 %v418, 108
        %v430 = vpop.permute.xlu0 %429
        %v431 = vrot.slane %v424, 4
        %v432 = vrot.slane %v426, 4
        %v433 = vrot.slane %v428, 4
        %v434 = vrot.slane %v430, 4
        %v435 = vsel %vm294, %v431, %v432
        %vm436 = vcmask 883712
        %v437 = vsel %vm436, %v424, %v435
        %v438 = vsel %vm436, %v426, %v432
        %v439 = vsel %vm294, %v433, %v434
        %v440 = vsel %vm436, %v428, %v439
        %v441 = vsel %vm436, %v430, %v434
        %446 = vst [vmem:[#allocation2 + $0x78] sm:$0xff] %v437
        %447 = vst [vmem:[#allocation2 + $0x80] sm:$0xf] %v438
        %448 = vst [vmem:[#allocation2 + $0x84] sm:$0xff] %v440
        %449 = vst [vmem:[#allocation2 + $0x8c] sm:$0xf] %v441
        %v450 = vld [vmem:[%s238] sm:$0xff]
        %v451 = vld [vmem:[%s238 + $0x8] sm:$0xff]
        %v452 = vld [vmem:[%s238 + $0x10] sm:$0xff]
        %v453 = vld [vmem:[%s238 + $0x18] sm:$0xff]
        %458 = vrot.lane.b32.xlu0 %v450, 92
        %v459 = vpop.permute.xlu0 %458
        %460 = vrot.lane.b32.xlu0 %v451, 92
        %v461 = vpop.permute.xlu0 %460
        %462 = vrot.lane.b32.xlu0 %v452, 92
        %v463 = vpop.permute.xlu0 %462
        %464 = vrot.lane.b32.xlu0 %v453, 92
        %v465 = vpop.permute.xlu0 %464
        %v466 = vrot.slane %v459, 4
        %v467 = vrot.slane %v461, 4
        %v468 = vrot.slane %v463, 4
        %v469 = vrot.slane %v465, 4
        %v470 = vsel %vm294, %v466, %v467
        %vm471 = vcmask 752640
        %v472 = vsel %vm471, %v459, %v470
        %v473 = vsel %vm471, %v461, %v467
        %v474 = vsel %vm294, %v468, %v469
        %v475 = vsel %vm471, %v463, %v474
        %v476 = vsel %vm471, %v465, %v469
        %481 = vst [vmem:[#allocation2 + $0x90] sm:$0xff] %v472
        %482 = vst [vmem:[#allocation2 + $0x98] sm:$0xf] %v473
        %483 = vst [vmem:[#allocation2 + $0x9c] sm:$0xff] %v475
        %484 = vst [vmem:[#allocation2 + $0xa4] sm:$0xf] %v476
        %v485 = vld [vmem:[%s238] sm:$0xff]
        %v486 = vld [vmem:[%s238 + $0x8] sm:$0xff]
        %v487 = vld [vmem:[%s238 + $0x10] sm:$0xff]
        %v488 = vld [vmem:[%s238 + $0x18] sm:$0xff]
        %493 = vrot.lane.b32.xlu0 %v485, 91
        %v494 = vpop.permute.xlu0 %493
        %495 = vrot.lane.b32.xlu0 %v486, 91
        %v496 = vpop.permute.xlu0 %495
        %497 = vrot.lane.b32.xlu0 %v487, 91
        %v498 = vpop.permute.xlu0 %497
        %499 = vrot.lane.b32.xlu0 %v488, 91
        %v500 = vpop.permute.xlu0 %499
        %v501 = vrot.slane %v494, 4
        %v502 = vrot.slane %v496, 4
        %v503 = vrot.slane %v498, 4
        %v504 = vrot.slane %v500, 4
        %v505 = vsel %vm294, %v501, %v502
        %vm506 = vcmask 744448
        %v507 = vsel %vm506, %v494, %v505
        %v508 = vsel %vm506, %v496, %v502
        %v509 = vsel %vm294, %v503, %v504
        %v510 = vsel %vm506, %v498, %v509
        %v511 = vsel %vm506, %v500, %v504
        %516 = vst [vmem:[#allocation2 + $0xa8] sm:$0xff] %v507
        %517 = vst [vmem:[#allocation2 + $0xb0] sm:$0xf] %v508
        %518 = vst [vmem:[#allocation2 + $0xb4] sm:$0xff] %v510
        %519 = vst [vmem:[#allocation2 + $0xbc] sm:$0xf] %v511
        %v520 = vld [vmem:[%s238] sm:$0xff]
        %v521 = vld [vmem:[%s238 + $0x8] sm:$0xff]
        %v522 = vld [vmem:[%s238 + $0x10] sm:$0xff]
        %v523 = vld [vmem:[%s238 + $0x18] sm:$0xff]
        %528 = vrot.lane.b32.xlu0 %v520, 90
        %v529 = vpop.permute.xlu0 %528
        %530 = vrot.lane.b32.xlu0 %v521, 90
        %v531 = vpop.permute.xlu0 %530
        %532 = vrot.lane.b32.xlu0 %v522, 90
        %v533 = vpop.permute.xlu0 %532
        %534 = vrot.lane.b32.xlu0 %v523, 90
        %v535 = vpop.permute.xlu0 %534
        %v536 = vrot.slane %v529, 4
        %v537 = vrot.slane %v531, 4
        %v538 = vrot.slane %v533, 4
        %v539 = vrot.slane %v535, 4
        %v540 = vsel %vm294, %v536, %v537
        %vm541 = vcmask 736256
        %v542 = vsel %vm541, %v529, %v540
        %v543 = vsel %vm541, %v531, %v537
        %v544 = vsel %vm294, %v538, %v539
        %v545 = vsel %vm541, %v533, %v544
        %v546 = vsel %vm541, %v535, %v539
        %551 = vst [vmem:[#allocation2 + $0xc0] sm:$0xff] %v542
        %552 = vst [vmem:[#allocation2 + $0xc8] sm:$0xf] %v543
        %553 = vst [vmem:[#allocation2 + $0xcc] sm:$0xff] %v545
        %554 = vst [vmem:[#allocation2 + $0xd4] sm:$0xf] %v546
      $region36: #{conv_bn_relu.1} parent=31 // pred_fallthru
        _
      %v555 = vld [vmem:[%s243] sm:$0xff]
      %v556 = vld [vmem:[#allocation2] sm:$0xff]
      %v557 = vld [vmem:[#allocation2 + $0x8] sm:$0xf]
      %v558 = vld [vmem:[#allocation2 + $0xc] sm:$0xff]
      %v559 = vld [vmem:[#allocation2 + $0x14] sm:$0xf]
      %v560 = vld [vmem:[#allocation2 + $0x18] sm:$0xff]
      %v561 = vld [vmem:[#allocation2 + $0x20] sm:$0xf]
      %v562 = vld [vmem:[#allocation2 + $0x24] sm:$0xff]
      %v563 = vld [vmem:[#allocation2 + $0x2c] sm:$0xf]
      %v564 = vld [vmem:[#allocation2 + $0x30] sm:$0xff]
      %v565 = vld [vmem:[#allocation2 + $0x38] sm:$0xf]
      %v566 = vld [vmem:[#allocation2 + $0x3c] sm:$0xff]
      %v567 = vld [vmem:[#allocation2 + $0x44] sm:$0xf]
      %v568 = vld [vmem:[#allocation2 + $0x48] sm:$0xff]
      %v569 = vld [vmem:[#allocation2 + $0x50] sm:$0xf]
      %v570 = vld [vmem:[#allocation2 + $0x54] sm:$0xff]
      %v571 = vld [vmem:[#allocation2 + $0x5c] sm:$0xf]
      %v572 = vld [vmem:[#allocation2 + $0x60] sm:$0xff]
      %v573 = vld [vmem:[#allocation2 + $0x68] sm:$0xf]
      %v574 = vld [vmem:[#allocation2 + $0x6c] sm:$0xff]
      %v575 = vld [vmem:[#allocation2 + $0x74] sm:$0xf]
      %v576 = vld [vmem:[#allocation2 + $0x78] sm:$0xff]
      %v577 = vld [vmem:[#allocation2 + $0x80] sm:$0xf]
      %v578 = vld [vmem:[#allocation2 + $0x84] sm:$0xff]
      %v579 = vld [vmem:[#allocation2 + $0x8c] sm:$0xf]
      %v580 = vld [vmem:[#allocation2 + $0x90] sm:$0xff]
      %v581 = vld [vmem:[#allocation2 + $0x98] sm:$0xf]
      %v582 = vld [vmem:[#allocation2 + $0x9c] sm:$0xff]
      %v583 = vld [vmem:[#allocation2 + $0xa4] sm:$0xf]
      %v584 = vld [vmem:[#allocation2 + $0xa8] sm:$0xff]
      %v585 = vld [vmem:[#allocation2 + $0xb0] sm:$0xf]
      %v586 = vld [vmem:[#allocation2 + $0xb4] sm:$0xff]
      %v587 = vld [vmem:[#allocation2 + $0xbc] sm:$0xf]
      %v588 = vld [vmem:[#allocation2 + $0xc0] sm:$0xff]
      %v589 = vld [vmem:[#allocation2 + $0xc8] sm:$0xf]
      %v590 = vld [vmem:[#allocation2 + $0xcc] sm:$0xff]
      %v591 = vld [vmem:[#allocation2 + $0xd4] sm:$0xf]
      %v592 = vld [vmem:[%s247] sm:$0xff]
      %594 = vset.pattern.permute.xlu0 0
      %595 = vperm.xlu0 %594, %v592
      %v596 = vpop.permute.xlu0 %595
      %v599 = vunpack.c.l.b16 %v555
      %v600 = vunpack.c.h.b16 %v555
      %v601 = vpack.c.b16 %v599, %v599
      %v602 = vpack.c.b16 %v600, %v600
      %v640 = vunpack.c.l.b16 %v556
      %v641 = vunpack.c.h.b16 %v556
      %v642 = vunpack.c.l.b16 %v557
      %v643 = vunpack.c.l.b16 %v558
      %v644 = vunpack.c.h.b16 %v558
      %v645 = vunpack.c.l.b16 %v559
      %v646 = vunpack.c.l.b16 %v560
      %v647 = vunpack.c.h.b16 %v560
      %v648 = vunpack.c.l.b16 %v561
      %v649 = vunpack.c.l.b16 %v562
      %v650 = vunpack.c.h.b16 %v562
      %v651 = vunpack.c.l.b16 %v563
      %v652 = vunpack.c.l.b16 %v564
      %v653 = vunpack.c.h.b16 %v564
      %v654 = vunpack.c.l.b16 %v565
      %v655 = vunpack.c.l.b16 %v566
      %v656 = vunpack.c.h.b16 %v566
      %v657 = vunpack.c.l.b16 %v567
      %v658 = vunpack.c.l.b16 %v568
      %v659 = vunpack.c.h.b16 %v568
      %v660 = vunpack.c.l.b16 %v569
      %v661 = vunpack.c.l.b16 %v570
      %v662 = vunpack.c.h.b16 %v570
      %v663 = vunpack.c.l.b16 %v571
      %v664 = vunpack.c.l.b16 %v572
      %v665 = vunpack.c.h.b16 %v572
      %v666 = vunpack.c.l.b16 %v573
      %v667 = vunpack.c.l.b16 %v574
      %v668 = vunpack.c.h.b16 %v574
      %v669 = vunpack.c.l.b16 %v575
      %v670 = vunpack.c.l.b16 %v576
      %v671 = vunpack.c.h.b16 %v576
      %v672 = vunpack.c.l.b16 %v577
      %v673 = vunpack.c.l.b16 %v578
      %v674 = vunpack.c.h.b16 %v578
      %v675 = vunpack.c.l.b16 %v579
      %v676 = vunpack.c.l.b16 %v580
      %v677 = vunpack.c.h.b16 %v580
      %v678 = vunpack.c.l.b16 %v581
      %v679 = vunpack.c.l.b16 %v582
      %v680 = vunpack.c.h.b16 %v582
      %v681 = vunpack.c.l.b16 %v583
      %v682 = vunpack.c.l.b16 %v584
      %v683 = vunpack.c.h.b16 %v584
      %v684 = vunpack.c.l.b16 %v585
      %v685 = vunpack.c.l.b16 %v586
      %v686 = vunpack.c.h.b16 %v586
      %v687 = vunpack.c.l.b16 %v587
      %v688 = vunpack.c.l.b16 %v588
      %v689 = vunpack.c.h.b16 %v588
      %v690 = vunpack.c.l.b16 %v589
      %v691 = vunpack.c.l.b16 %v590
      %v692 = vunpack.c.h.b16 %v590
      %v693 = vunpack.c.l.b16 %v591
      %v694 = vpack.c.b16 %v643, %v640
      %v695 = vpack.c.b16 %v644, %v641
      %v696 = vpack.c.b16 %v645, %v642
      %v697 = vpack.c.b16 %v649, %v646
      %v698 = vpack.c.b16 %v650, %v647
      %v699 = vpack.c.b16 %v651, %v648
      %v700 = vpack.c.b16 %v655, %v652
      %v701 = vpack.c.b16 %v656, %v653
      %v702 = vpack.c.b16 %v657, %v654
      %v703 = vpack.c.b16 %v661, %v658
      %v704 = vpack.c.b16 %v662, %v659
      %v705 = vpack.c.b16 %v663, %v660
      %v706 = vpack.c.b16 %v667, %v664
      %v707 = vpack.c.b16 %v668, %v665
      %v708 = vpack.c.b16 %v669, %v666
      %v709 = vpack.c.b16 %v673, %v670
      %v710 = vpack.c.b16 %v674, %v671
      %v711 = vpack.c.b16 %v675, %v672
      %v712 = vpack.c.b16 %v679, %v676
      %v713 = vpack.c.b16 %v680, %v677
      %v714 = vpack.c.b16 %v681, %v678
      %v715 = vpack.c.b16 %v685, %v682
      %v716 = vpack.c.b16 %v686, %v683
      %v717 = vpack.c.b16 %v687, %v684
      %v718 = vpack.c.b16 %v691, %v688
      %v719 = vpack.c.b16 %v692, %v689
      %v720 = vpack.c.b16 %v693, %v690
      %vm748 = vcmask 130048
      %v750 = vsel %vm748, %v602, 0
      %752 = vmatprep.subr.bf16.mxu0 %v716
      %753 = vmatpush1.bf16.msra.mxu0 %v715
      %754 = vmatprep.subr.bf16.mxu0 %v713
      %755 = vmatpush1.bf16.msra.mxu0 %v712
      %756 = vmatprep.subr.bf16.mxu0 %v710
      %757 = vmatpush1.bf16.msra.mxu0 %v709
      %758 = vmatprep.subr.bf16.mxu0 %v707
      %759 = vmatpush1.bf16.msra.mxu0 %v706
      %760 = vmatprep.subr.bf16.mxu0 %v704
      %761 = vmatpush1.bf16.msra.mxu0 %v703
      %762 = vmatprep.subr.bf16.mxu0 %v701
      %763 = vmatpush1.bf16.msra.mxu0 %v700
      %764 = vmatprep.subr.bf16.mxu0 %v698
      %765 = vmatpush1.bf16.msra.mxu0 %v697
      %766 = vmatprep.subr.bf16.mxu0 %v695
      %767 = vmatpush1.bf16.msra.mxu0 %v694
      %768 = vmatprep.subr.bf16.mxu0 0
      %769 = vmatpush2.bf16.msra.mxu0 0
      %770 = vmatprep.subr.bf16.mxu0 0
      %771 = vmatpush2.bf16.msra.mxu0 0
      %772 = vmatprep.subr.bf16.mxu0 0
      %773 = vmatpush2.bf16.msra.mxu0 0
      %774 = vmatprep.subr.bf16.mxu0 0
      %775 = vmatpush2.bf16.msra.mxu0 0
      %776 = vmatprep.subr.bf16.mxu0 0
      %777 = vmatpush2.bf16.msra.mxu0 0
      %778 = vmatprep.subr.bf16.mxu0 0
      %779 = vmatpush2.bf16.msra.mxu0 0
      %780 = vmatprep.subr.bf16.mxu0 0
      %781 = vmatpush2.bf16.msra.mxu0 0
      %782 = vmatprep.subr.bf16.mxu0 %v719
      %783 = vmatpush2.bf16.msra.mxu0 %v718
      %784 = vmatprep.mubr.bf16.mxu0 %v750
      %785 = vmatmul.mubr.bf16.gmra.mxu0 %v601
      %v786 = vpop.f32.mrf.mxu0
      %v787 = vadd.f32 %v596, %v786
      %v788 = vpop.f32.mrf.mxu0
      %v789 = vadd.f32 %v596, %v788
      %v790 = vpop.f32.mrf.mxu0
      %v791 = vpop.f32.mrf.mxu0
      %792 = vdwg.mxu0
      %793 = vmatprep.subr.bf16.mxu0 0
      %794 = vmatpush1.bf16.msra.mxu0 %v717
      %795 = vmatprep.subr.bf16.mxu0 0
      %796 = vmatpush1.bf16.msra.mxu0 %v714
      %797 = vmatprep.subr.bf16.mxu0 0
      %798 = vmatpush1.bf16.msra.mxu0 %v711
      %799 = vmatprep.subr.bf16.mxu0 0
      %800 = vmatpush1.bf16.msra.mxu0 %v708
      %801 = vmatprep.subr.bf16.mxu0 0
      %802 = vmatpush1.bf16.msra.mxu0 %v705
      %803 = vmatprep.subr.bf16.mxu0 0
      %804 = vmatpush1.bf16.msra.mxu0 %v702
      %805 = vmatprep.subr.bf16.mxu0 0
      %806 = vmatpush1.bf16.msra.mxu0 %v699
      %807 = vmatprep.subr.bf16.mxu0 0
      %808 = vmatpush1.bf16.msra.mxu0 %v696
      %809 = vmatprep.subr.bf16.mxu0 0
      %810 = vmatpush2.bf16.msra.mxu0 0
      %811 = vmatprep.subr.bf16.mxu0 0
      %812 = vmatpush2.bf16.msra.mxu0 0
      %813 = vmatprep.subr.bf16.mxu0 0
      %814 = vmatpush2.bf16.msra.mxu0 0
      %815 = vmatprep.subr.bf16.mxu0 0
      %816 = vmatpush2.bf16.msra.mxu0 0
      %817 = vmatprep.subr.bf16.mxu0 0
      %818 = vmatpush2.bf16.msra.mxu0 0
      %819 = vmatprep.subr.bf16.mxu0 0
      %820 = vmatpush2.bf16.msra.mxu0 0
      %821 = vmatprep.subr.bf16.mxu0 0
      %822 = vmatpush2.bf16.msra.mxu0 0
      %823 = vmatprep.subr.bf16.mxu0 0
      %824 = vmatpush2.bf16.msra.mxu0 %v720
      %825 = vmatprep.mubr.bf16.mxu0 %v750
      %826 = vmatmul.mubr.bf16.gmra.mxu0 %v601
      %v827 = vpop.f32.mrf.mxu0
      %v828 = vadd.f32 %v596, %v827
      %v829 = vpop.f32.mrf.mxu0
      %v830 = vpop.f32.mrf.mxu0
      %v831 = vpop.f32.mrf.mxu0
      %832 = vdwg.mxu0
      %v833 = vmax.f32 %v787, 0.0
      %v834 = vmax.f32 %v789, 0.0
      %v835 = vmax.f32 %v828, 0.0
      %836 = vst [vmem:[%s260] sm:$0xff] %v833
      %837 = vst [vmem:[%s260 + $0x8] sm:$0xff] %v834
      %838 = vst [vmem:[%s260 + $0x10] sm:$0xff] %v835
      %p839 = scmp.lt.s32.totalorder %s19, 1
      %s840 = scalar_select %p839, %s19, 1
      %p841 = scmp.lt.s32.totalorder %s20, 0
      %s842 = scalar_select %p841, %s20, 0
      %p843 = scmp.lt.s32.totalorder %s21, 0
      %s844 = scalar_select %p843, %s21, 0
      %s845 = smul.addr %s844, 3
      %s846 = smul.addr %s842, 3
      %s847 = sadd.s32 %s845, %s846
      %s848 = smul.addr %s840, 3
      %s849 = sadd.s32 %s847, %s848
      %s850 = smul.addr %s849, 8
      %s851 = scalar_lea.vmem %s3, %s850
      // Predicated region
      $region37: #{conv_bn_relu.1} parent=31 // pred_check
        %p852 = pneg %p135
      $region38: #{conv_bn_relu.1} parent=31 // pred_check_branch
        %854 = sbr.rel (%p852) target = $region40
      $region39: #{conv_bn_relu.1} parent=31 // pred_region
        _
      $region40: #{conv_bn_relu.1} parent=31 // pred_fallthru
        _
    $region32: #{conv_bn_relu.1} parent=5 // pred_fallthru
      _
    %p855 = scmp.le.s32.totalorder 2, %s9
    // Predicated region
    $region41: #{conv_bn_relu.1} parent=5 // pred_check
      %p856 = pneg %p855
    $region42: #{conv_bn_relu.1} parent=5 // pred_check_branch
      %858 = sbr.rel (%p856) target = $region44
    $region43: #{conv_bn_relu.1} parent=5 // pred_region
      %s859 = ssub.s32 %s9, 2
      // Predicated region
      $region45: #{conv_bn_relu.1} parent=43 // pred_check
        %p860 = pneg %p141
      $region46: #{conv_bn_relu.1} parent=43 // pred_check_branch
        %862 = sbr.rel (%p860) target = $region48
      $region47: #{conv_bn_relu.1} parent=43 // pred_region
        %p863 = scmp.lt.s32.totalorder %s22, 1
        %s864 = scalar_select %p863, %s22, 1
        %p865 = scmp.lt.s32.totalorder %s23, 0
        %s866 = scalar_select %p865, %s23, 0
        %p867 = scmp.lt.s32.totalorder %s24, 0
        %s868 = scalar_select %p867, %s24, 0
        %s869 = smul.addr %s868, 3
        %s870 = smul.addr %s866, 3
        %s871 = sadd.s32 %s869, %s870
        %s872 = smul.addr %s864, 3
        %s873 = sadd.s32 %s871, %s872
        %s874 = smul.addr %s873, 8
        %s875 = scalar_lea.vmem %s3, %s874
      $region48: #{conv_bn_relu.1} parent=43 // pred_fallthru
        _
    $region44: #{conv_bn_relu.1} parent=5 // pred_fallthru
      _
  $region6: #{conv_bn_relu.1} parent=0 // loop_footer
    %s13 = sadd.s32 1, %s9
  $region7: #{conv_bn_relu.1} parent=0 // loop_footer_branch
    %8 = sbr.rel target = $region3
  $region8: #{conv_bn_relu.1} parent=0 // loop_exit
    _

</llo_original>
